<compile_context>
chip_gen: v7x
topology: tpu7x:2x2x1
jax: 0.10.0
libtpu: 0.0.40
codegen_flags: <defaults>
</compile_context>

<pallas_src>
import jax
import jax.numpy as jnp
from jax.experimental import pallas as pl
from jax.experimental.pallas import tpu as pltpu


def _mlp_kernel(x_ref, w1_ref, b1_ref, w2_ref, b2_ref, w3_ref, b3_ref, o_ref):
    x = x_ref[...]                        # (TM, num_agents) f32
    k = x.shape[1]                        # num_agents (static Python int)
    num_actions = o_ref.shape[1]          # real output width (static)

    # ---- fc1 + relu ----
    if k <= 16:
        # VPU broadcast-FMA over the tiny feature dim (bias folded into the
        # first FMA); avoids a degenerate K-deep MXU pass.
        h1 = x[:, 0:1] * w1_ref[0:1, :] + b1_ref[...]
        for j in range(1, k):             # static unroll (k is a Python int)
            h1 = h1 + x[:, j:j + 1] * w1_ref[j:j + 1, :]
    else:
        h1 = jnp.dot(x, w1_ref[...], preferred_element_type=jnp.float32)
        h1 = h1 + b1_ref[...]
    h1 = jnp.maximum(h1, 0.0)

    # ---- fc2 + relu (bf16 MXU operands, f32 accumulation) ----
    h2 = jnp.dot(h1.astype(w2_ref.dtype), w2_ref[...],
                 preferred_element_type=jnp.float32) + b2_ref[...]
    h2 = jnp.maximum(h2, 0.0)

    # ---- fc3: MXU on the 128-padded weight, narrow store of real columns ----
    out = jnp.dot(h2.astype(w3_ref.dtype), w3_ref[...],
                  preferred_element_type=jnp.float32)
    o_ref[...] = (out[:, :num_actions] + b3_ref[...]).astype(o_ref.dtype)


def _pick_block_m(batch, tm):
    """Batch-adaptive, sublane-aligned tile height."""
    tm = max(8, (tm // 8) * 8)                 # 8-align caller-supplied tile
    if batch <= 8:
        return batch                           # single full-extent block
    if batch >= 2 * tm:
        return tm                              # plenty of grid steps already
    # small/medium batches: aim for >= 2 grid steps (keeps both v7x TCs busy)
    bm = ((batch + 1) // 2 + 7) // 8 * 8       # ~ceil(batch/2), 8-aligned
    bm = min(bm, (batch // 8) * 8)             # never exceed the array extent
    return max(8, min(bm, tm))


def net_forward(x, params, *, tm=1024, use_bf16=True):
    """x: (batch, num_agents) float32. params: dict of transposed weights/biases."""
    w1, b1 = params["w1"], params["b1"]
    w2, b2 = params["w2"], params["b2"]
    w3, b3 = params["w3"], params["b3"]

    batch, num_agents = x.shape
    hidden = w1.shape[1]
    num_actions = w3.shape[1]

    # Pad w3 columns to a lane multiple only as an MXU operand; the pad
    # columns never reach HBM (sliced off in-register before the store).
    n_pad = ((num_actions + 127) // 128) * 128
    if n_pad != num_actions:
        w3p = jnp.zeros((hidden, n_pad), w3.dtype).at[:, :num_actions].set(w3)
    else:
        w3p = w3

    # Pre-cast MXU weights once (outside the per-tile path).
    mm_dtype = jnp.bfloat16 if use_bf16 else jnp.float32
    w2m = w2.astype(mm_dtype)
    w3m = w3p.astype(mm_dtype)

    block_m = _pick_block_m(batch, tm)
    grid = (pl.cdiv(batch, block_m),)

    # Grid-invariant specs: weights/biases stay resident in VMEM (DMA'd once).
    def resident(arr):
        return pl.BlockSpec(arr.shape, lambda i, _nd=arr.ndim: (0,) * _nd)

    weight_bytes = sum(int(a.size) * a.dtype.itemsize
                       for a in (w1, b1, w2m, b2, w3m, b3))
    cost = pl.CostEstimate(
        flops=2 * batch * hidden * (num_agents + hidden + n_pad),
        transcendentals=0,
        bytes_accessed=int(x.size) * x.dtype.itemsize
        + weight_bytes
        + batch * num_actions * 4,
    )

    out = pl.pallas_call(
        _mlp_kernel,
        out_shape=jax.ShapeDtypeStruct((batch, num_actions), jnp.float32),
        grid_spec=pltpu.PrefetchScalarGridSpec(
            num_scalar_prefetch=0,
            grid=grid,
            in_specs=[
                pl.BlockSpec((block_m, num_agents), lambda i: (i, 0)),
                resident(w1), resident(b1),
                resident(w2m), resident(b2),
                resident(w3m), resident(b3),
            ],
            out_specs=pl.BlockSpec((block_m, num_actions), lambda i: (i, 0)),
        ),
        compiler_params=pltpu.CompilerParams(
            dimension_semantics=("parallel",),
        ),
        cost_estimate=cost,
    )(x, w1, b1, w2m, b2, w3m, b3)

    return out


def init_params(key, num_agents, num_actions, hidden=128):
    """Deterministic init mimicking nn.Linear's U(-1/sqrt(fan_in), 1/sqrt(fan_in)).

    Weights are stored as (in_features, out_features), i.e. the transpose of
    PyTorch's (out, in) layout, so the kernel does x @ W + b.
    """
    ks = jax.random.split(key, 6)

    def linear(kw, kb, fan_in, fan_out):
        bound = 1.0 / jnp.sqrt(jnp.float32(fan_in))
        w = jax.random.uniform(kw, (fan_in, fan_out), jnp.float32, -bound, bound)
        b = jax.random.uniform(kb, (1, fan_out), jnp.float32, -bound, bound)
        return w, b

    w1, b1 = linear(ks[0], ks[1], num_agents, hidden)
    w2, b2 = linear(ks[2], ks[3], hidden, hidden)
    w3, b3 = linear(ks[4], ks[5], hidden, num_actions)
    return {"w1": w1, "b1": b1, "w2": w2, "b2": b2, "w3": w3, "b3": b3}


def net_forward_ref(x, p, *, use_bf16=True):
    """Pure-JAX reference. With use_bf16=True it mirrors the kernel's bf16
    MXU-operand / f32-accumulation path; with use_bf16=False it is the exact
    f32 forward of the PyTorch module."""
    mm_dtype = jnp.bfloat16 if use_bf16 else jnp.float32
    h = jnp.maximum(x @ p["w1"] + p["b1"], 0.0)
    h = jnp.maximum(
        jnp.dot(h.astype(mm_dtype), p["w2"].astype(mm_dtype),
                preferred_element_type=jnp.float32) + p["b2"], 0.0)
    return jnp.dot(h.astype(mm_dtype), p["w3"].astype(mm_dtype),
                   preferred_element_type=jnp.float32) + p["b3"]


if __name__ == "__main__":
    num_agents = 4
    num_actions = 8

    key = jax.random.PRNGKey(0)
    k_params, k_x0, k_x1, k_x2 = jax.random.split(key, 4)
    params = init_params(k_params, num_agents, num_actions)

    # Tiny batch: single full-extent block.
    x0 = jax.random.normal(k_x0, (2, num_agents), dtype=jnp.float32)
    o0 = jax.block_until_ready(net_forward(x0, params))
    assert o0.shape == (2, num_actions)
    assert jnp.allclose(o0, net_forward_ref(x0, params), atol=5e-4, rtol=1e-3)

    # Multi-step grid with a ragged (masked) boundary block, small tile.
    x1 = jax.random.normal(k_x1, (300, num_agents), dtype=jnp.float32)
    o1 = jax.block_until_ready(net_forward(x1, params, tm=128))
    assert o1.shape == (300, num_actions)
    assert jnp.allclose(o1, net_forward_ref(x1, params), atol=5e-4, rtol=1e-3)
    # Loose sanity check against the pure-f32 PyTorch-equivalent forward
    # (bounds the bf16 MXU-operand error).
    assert jnp.allclose(o1, net_forward_ref(x1, params, use_bf16=False),
                        atol=3e-2, rtol=3e-2)

    # Default adaptive-tile path.
    x2 = jax.random.normal(k_x2, (8, num_agents), dtype=jnp.float32)
    o2 = jax.block_until_ready(net_forward(x2, params))
    assert o2.shape == (8, num_actions)
    assert jnp.allclose(o2, net_forward_ref(x2, params), atol=5e-4, rtol=1e-3)

    print("KERNEL_OK")
</pallas_src>

<mosaic_0001>
module attributes {stable_mosaic.version = 11 : i64} {
  func.func @_mlp_kernel(%arg0: i32, %arg1: memref<2x4xf32, #tpu.memory_space<vmem>>, %arg2: memref<4x128xf32, #tpu.memory_space<vmem>>, %arg3: memref<1x128xf32, #tpu.memory_space<vmem>>, %arg4: memref<128x128xbf16, #tpu.memory_space<vmem>>, %arg5: memref<1x128xf32, #tpu.memory_space<vmem>>, %arg6: memref<128x128xbf16, #tpu.memory_space<vmem>>, %arg7: memref<1x8xf32, #tpu.memory_space<vmem>>, %arg8: memref<2x8xf32, #tpu.memory_space<vmem>>) attributes {dimension_semantics = [#tpu.dimension_semantics<parallel>], iteration_bounds = array<i64: 1>, scalar_prefetch = 0 : i64, scratch_operands = 0 : i64, tpu.core_type = #tpu.core_type<tc>, window_params = [{transform_indices = @transform_0, window_bounds = array<i64: 2, 4>}, {pipeline_mode = #tpu.pipeline_mode<synchronous>, transform_indices = @transform_1, window_bounds = array<i64: 4, 128>}, {pipeline_mode = #tpu.pipeline_mode<synchronous>, transform_indices = @transform_2, window_bounds = array<i64: 1, 128>}, {pipeline_mode = #tpu.pipeline_mode<synchronous>, transform_indices = @transform_3, window_bounds = array<i64: 128, 128>}, {pipeline_mode = #tpu.pipeline_mode<synchronous>, transform_indices = @transform_4, window_bounds = array<i64: 1, 128>}, {pipeline_mode = #tpu.pipeline_mode<synchronous>, transform_indices = @transform_5, window_bounds = array<i64: 128, 128>}, {pipeline_mode = #tpu.pipeline_mode<synchronous>, transform_indices = @transform_6, window_bounds = array<i64: 1, 8>}, {transform_indices = @transform_7, window_bounds = array<i64: 2, 8>}]} {
    %c0 = arith.constant 0 : index
    %c0_0 = arith.constant 0 : index
    %0 = vector.load %arg1[%c0, %c0_0] : memref<2x4xf32, #tpu.memory_space<vmem>>, vector<2x4xf32>
    %1 = vector.extract_strided_slice %0 {offsets = [0, 0], sizes = [2, 1], strides = [1, 1]} : vector<2x4xf32> to vector<2x1xf32>
    %c0_1 = arith.constant 0 : index
    %c0_2 = arith.constant 0 : index
    %2 = vector.load %arg2[%c0_1, %c0_2] : memref<4x128xf32, #tpu.memory_space<vmem>>, vector<1x128xf32>
    %3 = vector.broadcast %1 : vector<2x1xf32> to vector<2x128xf32>
    %4 = vector.broadcast %2 : vector<1x128xf32> to vector<2x128xf32>
    %5 = arith.mulf %3, %4 : vector<2x128xf32>
    %c0_3 = arith.constant 0 : index
    %c0_4 = arith.constant 0 : index
    %6 = vector.load %arg3[%c0_3, %c0_4] : memref<1x128xf32, #tpu.memory_space<vmem>>, vector<1x128xf32>
    %7 = vector.broadcast %6 : vector<1x128xf32> to vector<2x128xf32>
    %8 = arith.addf %5, %7 : vector<2x128xf32>
    %9 = vector.extract_strided_slice %0 {offsets = [0, 1], sizes = [2, 1], strides = [1, 1]} : vector<2x4xf32> to vector<2x1xf32>
    %c1 = arith.constant 1 : index
    %c0_5 = arith.constant 0 : index
    %10 = vector.load %arg2[%c1, %c0_5] : memref<4x128xf32, #tpu.memory_space<vmem>>, vector<1x128xf32>
    %11 = vector.broadcast %9 : vector<2x1xf32> to vector<2x128xf32>
    %12 = vector.broadcast %10 : vector<1x128xf32> to vector<2x128xf32>
    %13 = arith.mulf %11, %12 : vector<2x128xf32>
    %14 = arith.addf %8, %13 : vector<2x128xf32>
    %15 = vector.extract_strided_slice %0 {offsets = [0, 2], sizes = [2, 1], strides = [1, 1]} : vector<2x4xf32> to vector<2x1xf32>
    %c2 = arith.constant 2 : index
    %c0_6 = arith.constant 0 : index
    %16 = vector.load %arg2[%c2, %c0_6] : memref<4x128xf32, #tpu.memory_space<vmem>>, vector<1x128xf32>
    %17 = vector.broadcast %15 : vector<2x1xf32> to vector<2x128xf32>
    %18 = vector.broadcast %16 : vector<1x128xf32> to vector<2x128xf32>
    %19 = arith.mulf %17, %18 : vector<2x128xf32>
    %20 = arith.addf %14, %19 : vector<2x128xf32>
    %21 = vector.extract_strided_slice %0 {offsets = [0, 3], sizes = [2, 1], strides = [1, 1]} : vector<2x4xf32> to vector<2x1xf32>
    %c3 = arith.constant 3 : index
    %c0_7 = arith.constant 0 : index
    %22 = vector.load %arg2[%c3, %c0_7] : memref<4x128xf32, #tpu.memory_space<vmem>>, vector<1x128xf32>
    %23 = vector.broadcast %21 : vector<2x1xf32> to vector<2x128xf32>
    %24 = vector.broadcast %22 : vector<1x128xf32> to vector<2x128xf32>
    %25 = arith.mulf %23, %24 : vector<2x128xf32>
    %26 = arith.addf %20, %25 : vector<2x128xf32>
    %cst = arith.constant 0.000000e+00 : f32
    %27 = vector.broadcast %cst : f32 to vector<2x128xf32>
    %28 = arith.maximumf %26, %27 : vector<2x128xf32>
    %29 = arith.truncf %28 : vector<2x128xf32> to vector<2x128xbf16>
    %c0_8 = arith.constant 0 : index
    %c0_9 = arith.constant 0 : index
    %30 = vector.load %arg4[%c0_8, %c0_9] : memref<128x128xbf16, #tpu.memory_space<vmem>>, vector<128x128xbf16>
    %cst_10 = arith.constant dense<0.000000e+00> : vector<2x128xf32>
    %31 = tpu.matmul %29, %30, %cst_10 {dimension_numbers = #tpu.dot_dimension_numbers<[1], [0], [0], [1], [0, 0, 1, 1], [], []>} : vector<2x128xbf16>, vector<128x128xbf16>, vector<2x128xf32> -> vector<2x128xf32>
    %c0_11 = arith.constant 0 : index
    %c0_12 = arith.constant 0 : index
    %32 = vector.load %arg5[%c0_11, %c0_12] : memref<1x128xf32, #tpu.memory_space<vmem>>, vector<1x128xf32>
    %33 = vector.broadcast %32 : vector<1x128xf32> to vector<2x128xf32>
    %34 = arith.addf %31, %33 : vector<2x128xf32>
    %cst_13 = arith.constant 0.000000e+00 : f32
    %35 = vector.broadcast %cst_13 : f32 to vector<2x128xf32>
    %36 = arith.maximumf %34, %35 : vector<2x128xf32>
    %37 = arith.truncf %36 : vector<2x128xf32> to vector<2x128xbf16>
    %c0_14 = arith.constant 0 : index
    %c0_15 = arith.constant 0 : index
    %38 = vector.load %arg6[%c0_14, %c0_15] : memref<128x128xbf16, #tpu.memory_space<vmem>>, vector<128x128xbf16>
    %cst_16 = arith.constant dense<0.000000e+00> : vector<2x128xf32>
    %39 = tpu.matmul %37, %38, %cst_16 {dimension_numbers = #tpu.dot_dimension_numbers<[1], [0], [0], [1], [0, 0, 1, 1], [], []>} : vector<2x128xbf16>, vector<128x128xbf16>, vector<2x128xf32> -> vector<2x128xf32>
    %40 = vector.extract_strided_slice %39 {offsets = [0, 0], sizes = [2, 8], strides = [1, 1]} : vector<2x128xf32> to vector<2x8xf32>
    %c0_17 = arith.constant 0 : index
    %c0_18 = arith.constant 0 : index
    %41 = vector.load %arg7[%c0_17, %c0_18] : memref<1x8xf32, #tpu.memory_space<vmem>>, vector<1x8xf32>
    %42 = vector.broadcast %41 : vector<1x8xf32> to vector<2x8xf32>
    %43 = arith.addf %40, %42 : vector<2x8xf32>
    %c0_19 = arith.constant 0 : index
    %c0_20 = arith.constant 0 : index
    %44 = vector.load %arg8[%c0_19, %c0_20] : memref<2x8xf32, #tpu.memory_space<vmem>>, vector<2x8xf32>
    tpu.vector_store %arg8[%c0_19, %c0_20], %43 {strides = array<i32>} : memref<2x8xf32, #tpu.memory_space<vmem>>, vector<2x8xf32>,
    return
  }
  func.func @transform_0(%arg0: i32) -> (i32, i32) {
    %c0_i32 = arith.constant 0 : i32
    %c0_i32_0 = arith.constant 0 : i32
    return %arg0, %c0_i32 : i32, i32
  }
  func.func @transform_1(%arg0: i32) -> (i32, i32) {
    %c0_i32 = arith.constant 0 : i32
    %c0_i32_0 = arith.constant 0 : i32
    %c0_i32_1 = arith.constant 0 : i32
    return %c0_i32, %c0_i32_0 : i32, i32
  }
  func.func @transform_2(%arg0: i32) -> (i32, i32) {
    %c0_i32 = arith.constant 0 : i32
    %c0_i32_0 = arith.constant 0 : i32
    %c0_i32_1 = arith.constant 0 : i32
    return %c0_i32, %c0_i32_0 : i32, i32
  }
  func.func @transform_3(%arg0: i32) -> (i32, i32) {
    %c0_i32 = arith.constant 0 : i32
    %c0_i32_0 = arith.constant 0 : i32
    %c0_i32_1 = arith.constant 0 : i32
    return %c0_i32, %c0_i32_0 : i32, i32
  }
  func.func @transform_4(%arg0: i32) -> (i32, i32) {
    %c0_i32 = arith.constant 0 : i32
    %c0_i32_0 = arith.constant 0 : i32
    %c0_i32_1 = arith.constant 0 : i32
    return %c0_i32, %c0_i32_0 : i32, i32
  }
  func.func @transform_5(%arg0: i32) -> (i32, i32) {
    %c0_i32 = arith.constant 0 : i32
    %c0_i32_0 = arith.constant 0 : i32
    %c0_i32_1 = arith.constant 0 : i32
    return %c0_i32, %c0_i32_0 : i32, i32
  }
  func.func @transform_6(%arg0: i32) -> (i32, i32) {
    %c0_i32 = arith.constant 0 : i32
    %c0_i32_0 = arith.constant 0 : i32
    %c0_i32_1 = arith.constant 0 : i32
    return %c0_i32, %c0_i32_0 : i32, i32
  }
  func.func @transform_7(%arg0: i32) -> (i32, i32) {
    %c0_i32 = arith.constant 0 : i32
    %c0_i32_0 = arith.constant 0 : i32
    return %arg0, %c0_i32 : i32, i32
  }
}

</mosaic_0001>

<llo_original>
// kernel: tpu_custom_call.1
$region0: #{tpu_custom_call.1}
  #allocation0 [shape = 'u32[]', space=smem, size = 0x4, offset = 0x4, fixed_abs, tag = 'smem constant byte address 0x4 - core index']
  #allocation1 [shape = 'u32[144,128]{1,0:T(1,128)}', space=vmem, size = 0x12000, scoped, tag = 'internal scratch']
  %s0 = inlined_call_operand.hbm [shape: f32[2,4], index: 0, kind: input, shape index: {}]
  %s1 = inlined_call_operand.hbm [shape: f32[4,128], index: 1, kind: input, shape index: {}]
  %s2 = inlined_call_operand.vmem [shape: f32[1,128], index: 2, kind: input, shape index: {}]
  %s3 = inlined_call_operand.hbm [shape: bf16[128,128], index: 3, kind: input, shape index: {}]
  %s4 = inlined_call_operand.vmem [shape: f32[1,128], index: 4, kind: input, shape index: {}]
  %s5 = inlined_call_operand.hbm [shape: bf16[128,128], index: 5, kind: input, shape index: {}]
  %s6 = inlined_call_operand.vmem [shape: f32[1,8], index: 6, kind: input, shape index: {}]
  %s7 = inlined_call_operand.hbm [shape: f32[2,8], index: 7, kind: output, shape index: {}]
  %s8 = sld [smem:[#allocation0]]
  $region54: #{tpu_custom_call.1} parent=0
    _
  %s10 = ssub.s32 1, %s8
  %s11 = scalar_select 0, %s10, %s8
  $region1: #{tpu_custom_call.1} parent=0
    #allocation2 [shape = 'u8[1024]{0}', space=vmem, size = 0x400, scoped, tag = 'input window, operand 0, single buffered']
    #allocation3 [shape = 's32[1]{0}', space=sflag, size = 0x4, scoped, tag = 'scoped memory for tpu_custom_call.1']
    #allocation4 [shape = 's32[1]{0}', space=sflag, size = 0x4, scoped, tag = 'scoped memory for tpu_custom_call.1']
    #allocation5 [shape = 'u8[2048]{0}', space=vmem, size = 0x800, scoped, tag = 'input window, operand 1, single buffered']
    #allocation6 [shape = 's32[1]{0}', space=sflag, size = 0x4, scoped, tag = 'scoped memory for tpu_custom_call.1']
    #allocation7 [shape = 'u8[32768]{0}', space=vmem, size = 0x8000, scoped, tag = 'input window, operand 3, single buffered']
    #allocation8 [shape = 'u8[32768]{0}', space=vmem, size = 0x8000, scoped, tag = 'input window, operand 5, single buffered']
    #allocation9 [shape = 's32[1]{0}', space=sflag, size = 0x4, scoped, tag = 'scoped memory for tpu_custom_call.1']
    #allocation10 [shape = 'u8[1024]{0}', space=vmem, size = 0x400, scoped, tag = 'output window, operand 0, single buffered']
    %12 = vsyncpa [#allocation3], 0
    %13 = vsyncpa [#allocation6], 0
    %14 = vsyncpa [#allocation9], 0
    %15 = vsyncpa [#allocation4], 0
    // Predicated region
    $region2: #{tpu_custom_call.1} parent=1 // pred_check
      _
    $region3: #{tpu_custom_call.1} parent=1 // pred_check_branch
      %17 = sbr.rel (0) target = $region5
    $region4: #{tpu_custom_call.1} parent=1 // pred_region
      %s19 = ssub.s32 32, 32
      %20 = vsyncadd [#allocation3], %s19
      %s22 = sshll.u32 [#allocation2], 4
      %s23 = int_to_ptr.vmem [resolvable:$true] %s22
      %25 = dma.hbm_to_vmem [thread:$0]  %s0, 32, %s23, [#allocation3]
    $region5: #{tpu_custom_call.1} parent=1 // pred_fallthru
      _
    // Predicated region
    $region6: #{tpu_custom_call.1} parent=1 // pred_check
      _
    $region7: #{tpu_custom_call.1} parent=1 // pred_check_branch
      %27 = sbr.rel (0) target = $region9
    $region8: #{tpu_custom_call.1} parent=1 // pred_region
      %s29 = ssub.s32 64, 64
      %30 = vsyncadd [#allocation6], %s29
      %s32 = sshll.u32 [#allocation5], 4
      %s33 = int_to_ptr.vmem [resolvable:$true] %s32
      %35 = dma.hbm_to_vmem [thread:$0]  %s1, 64, %s33, [#allocation6]
    $region9: #{tpu_custom_call.1} parent=1 // pred_fallthru
      _
    // Predicated region
    $region10: #{tpu_custom_call.1} parent=1 // pred_check
      _
    $region11: #{tpu_custom_call.1} parent=1 // pred_check_branch
      %37 = sbr.rel (0) target = $region13
    $region12: #{tpu_custom_call.1} parent=1 // pred_region
      _
    $region13: #{tpu_custom_call.1} parent=1 // pred_fallthru
      _
    // Predicated region
    $region14: #{tpu_custom_call.1} parent=1 // pred_check
      _
    $region15: #{tpu_custom_call.1} parent=1 // pred_check_branch
      %39 = sbr.rel (0) target = $region17
    $region16: #{tpu_custom_call.1} parent=1 // pred_region
      %s41 = ssub.s32 1024, 1024
      %42 = vsyncadd [#allocation6], %s41
      %s43 = sshll.u32 [#allocation7], 4
      %s44 = int_to_ptr.vmem [resolvable:$true] %s43
      %49 = dma.hbm_to_vmem [thread:$0]  %s3, 1024, %s44, [#allocation6], 64, 64, 4
    $region17: #{tpu_custom_call.1} parent=1 // pred_fallthru
      _
    // Predicated region
    $region18: #{tpu_custom_call.1} parent=1 // pred_check
      _
    $region19: #{tpu_custom_call.1} parent=1 // pred_check_branch
      %51 = sbr.rel (0) target = $region21
    $region20: #{tpu_custom_call.1} parent=1 // pred_region
      _
    $region21: #{tpu_custom_call.1} parent=1 // pred_fallthru
      _
    // Predicated region
    $region22: #{tpu_custom_call.1} parent=1 // pred_check
      _
    $region23: #{tpu_custom_call.1} parent=1 // pred_check_branch
      %53 = sbr.rel (0) target = $region25
    $region24: #{tpu_custom_call.1} parent=1 // pred_region
      %s55 = ssub.s32 1024, 1024
      %56 = vsyncadd [#allocation9], %s55
      %s57 = sshll.u32 [#allocation8], 4
      %s58 = int_to_ptr.vmem [resolvable:$true] %s57
      %63 = dma.hbm_to_vmem [thread:$0]  %s5, 1024, %s58, [#allocation9], 64, 64, 4
    $region25: #{tpu_custom_call.1} parent=1 // pred_fallthru
      _
    // Predicated region
    $region26: #{tpu_custom_call.1} parent=1 // pred_check
      _
    $region27: #{tpu_custom_call.1} parent=1 // pred_check_branch
      %65 = sbr.rel (0) target = $region29
    $region28: #{tpu_custom_call.1} parent=1 // pred_region
      _
    $region29: #{tpu_custom_call.1} parent=1 // pred_fallthru
      _
    // Predicated region
    $region30: #{tpu_custom_call.1} parent=1 // pred_check
      _
    $region31: #{tpu_custom_call.1} parent=1 // pred_check_branch
      %67 = sbr.rel (0) target = $region33
    $region32: #{tpu_custom_call.1} parent=1 // pred_region
      %68 = dma.done [#allocation3], 32
    $region33: #{tpu_custom_call.1} parent=1 // pred_fallthru
      _
    // Predicated region
    $region34: #{tpu_custom_call.1} parent=1 // pred_check
      _
    $region35: #{tpu_custom_call.1} parent=1 // pred_check_branch
      %70 = sbr.rel (0) target = $region37
    $region36: #{tpu_custom_call.1} parent=1 // pred_region
      %71 = dma.done [#allocation6], 64
    $region37: #{tpu_custom_call.1} parent=1 // pred_fallthru
      _
    // Predicated region
    $region38: #{tpu_custom_call.1} parent=1 // pred_check
      _
    $region39: #{tpu_custom_call.1} parent=1 // pred_check_branch
      %73 = sbr.rel (0) target = $region41
    $region40: #{tpu_custom_call.1} parent=1 // pred_region
      %74 = dma.done [#allocation6], 1024
    $region41: #{tpu_custom_call.1} parent=1 // pred_fallthru
      _
    // Predicated region
    $region42: #{tpu_custom_call.1} parent=1 // pred_check
      _
    $region43: #{tpu_custom_call.1} parent=1 // pred_check_branch
      %76 = sbr.rel (0) target = $region45
    $region44: #{tpu_custom_call.1} parent=1 // pred_region
      %77 = dma.done [#allocation9], 1024
    $region45: #{tpu_custom_call.1} parent=1 // pred_fallthru
      _
    %v79 = vld [vmem:[#allocation2] sm:$0x3]
    %v80 = vld [vmem:[#allocation5] sm:$0x1]
    %82 = vset.pattern.permute.xlu0 0
    %83 = vperm.xlu0 %82, %v79
    %v84 = vpop.permute.xlu0 %83
    %v86 = vlaneseq
    %v87 = vshrl.u32 %v86, 7
    %v88 = vsub.s32 0, %v87
    %v89 = vrot.slane %v80, %v88
    %v90 = vmul.f32 %v84, %v89
    %v91 = vld [vmem:[%s2] sm:$0x1]
    %v93 = vlaneseq
    %v94 = vshrl.u32 %v93, 7
    %v95 = vsub.s32 0, %v94
    %v96 = vrot.slane %v91, %v95
    %v98 = vadd.f32 %v90, %v96
    %v99 = vld [vmem:[#allocation5 + $0x1] sm:$0x1]
    %100 = vset.pattern.permute.xlu0 1
    %101 = vperm.xlu0 %100, %v79
    %v102 = vpop.permute.xlu0 %101
    %v104 = vlaneseq
    %v105 = vshrl.u32 %v104, 7
    %v106 = vsub.s32 0, %v105
    %v107 = vrot.slane %v99, %v106
    %v108 = vmul.f32 %v102, %v107
    %v109 = vadd.f32 %v98, %v108
    %v110 = vld [vmem:[#allocation5 + $0x2] sm:$0x1]
    %111 = vset.pattern.permute.xlu0 2
    %112 = vperm.xlu0 %111, %v79
    %v113 = vpop.permute.xlu0 %112
    %v115 = vlaneseq
    %v116 = vshrl.u32 %v115, 7
    %v117 = vsub.s32 0, %v116
    %v118 = vrot.slane %v110, %v117
    %v119 = vmul.f32 %v113, %v118
    %v120 = vadd.f32 %v109, %v119
    %v121 = vld [vmem:[#allocation5 + $0x3] sm:$0x1]
    %122 = vset.pattern.permute.xlu0 3
    %123 = vperm.xlu0 %122, %v79
    %v124 = vpop.permute.xlu0 %123
    %v126 = vlaneseq
    %v127 = vshrl.u32 %v126, 7
    %v128 = vsub.s32 0, %v127
    %v129 = vrot.slane %v121, %v128
    %v130 = vmul.f32 %v124, %v129
    %v131 = vadd.f32 %v120, %v130
    %v132 = vmax.f32 %v131, 0.0
    %v133 = vpack.c.bf16 %v132, %v132
    %v134 = vld [vmem:[#allocation7] sm:$0xf]
    %v135 = vld [vmem:[#allocation7 + $0x4] sm:$0xf]
    %v136 = vld [vmem:[#allocation7 + $0x8] sm:$0xf]
    %v137 = vld [vmem:[#allocation7 + $0xc] sm:$0xf]
    %v138 = vld [vmem:[#allocation7 + $0x10] sm:$0xf]
    %v139 = vld [vmem:[#allocation7 + $0x14] sm:$0xf]
    %v140 = vld [vmem:[#allocation7 + $0x18] sm:$0xf]
    %v141 = vld [vmem:[#allocation7 + $0x1c] sm:$0xf]
    %v142 = vld [vmem:[#allocation7 + $0x20] sm:$0xf]
    %v143 = vld [vmem:[#allocation7 + $0x24] sm:$0xf]
    %v144 = vld [vmem:[#allocation7 + $0x28] sm:$0xf]
    %v145 = vld [vmem:[#allocation7 + $0x2c] sm:$0xf]
    %v146 = vld [vmem:[#allocation7 + $0x30] sm:$0xf]
    %v147 = vld [vmem:[#allocation7 + $0x34] sm:$0xf]
    %v148 = vld [vmem:[#allocation7 + $0x38] sm:$0xf]
    %v149 = vld [vmem:[#allocation7 + $0x3c] sm:$0xf]
    %v150 = vld [vmem:[%s4] sm:$0x1]
    %v152 = vlaneseq
    %v153 = vshrl.u32 %v152, 7
    %v154 = vsub.s32 0, %v153
    %v155 = vrot.slane %v150, %v154
    %v173 = vunpack.c.l.b16 %v134
    %v174 = vunpack.c.l.b16 %v135
    %v175 = vunpack.c.l.b16 %v136
    %v176 = vunpack.c.l.b16 %v137
    %v177 = vunpack.c.l.b16 %v138
    %v178 = vunpack.c.l.b16 %v139
    %v179 = vunpack.c.l.b16 %v140
    %v180 = vunpack.c.l.b16 %v141
    %v181 = vunpack.c.l.b16 %v142
    %v182 = vunpack.c.l.b16 %v143
    %v183 = vunpack.c.l.b16 %v144
    %v184 = vunpack.c.l.b16 %v145
    %v185 = vunpack.c.l.b16 %v146
    %v186 = vunpack.c.l.b16 %v147
    %v187 = vunpack.c.l.b16 %v148
    %v188 = vunpack.c.l.b16 %v149
    %v189 = vpack.c.b16 %v174, %v173
    %v190 = vpack.c.b16 %v176, %v175
    %v191 = vpack.c.b16 %v178, %v177
    %v192 = vpack.c.b16 %v180, %v179
    %v193 = vpack.c.b16 %v182, %v181
    %v194 = vpack.c.b16 %v184, %v183
    %v195 = vpack.c.b16 %v186, %v185
    %v196 = vpack.c.b16 %v188, %v187
    %205 = vmatprep.subr.bf16.mxu0 0
    %206 = vmatpush1.bf16.msra.mxu0 %v189
    %207 = vmatprep.subr.bf16.mxu0 0
    %208 = vmatpush1.bf16.msra.mxu0 %v190
    %209 = vmatprep.subr.bf16.mxu0 0
    %210 = vmatpush1.bf16.msra.mxu0 %v191
    %211 = vmatprep.subr.bf16.mxu0 0
    %212 = vmatpush1.bf16.msra.mxu0 %v192
    %213 = vmatprep.subr.bf16.mxu0 0
    %214 = vmatpush1.bf16.msra.mxu0 %v193
    %215 = vmatprep.subr.bf16.mxu0 0
    %216 = vmatpush1.bf16.msra.mxu0 %v194
    %217 = vmatprep.subr.bf16.mxu0 0
    %218 = vmatpush1.bf16.msra.mxu0 %v195
    %219 = vmatprep.subr.bf16.mxu0 0
    %220 = vmatpush1.bf16.msra.mxu0 %v196
    %221 = vmatprep.subr.bf16.mxu0 0
    %222 = vmatpush1.bf16.msra.mxu0 0
    %223 = vmatprep.subr.bf16.mxu0 0
    %224 = vmatpush1.bf16.msra.mxu0 0
    %225 = vmatprep.subr.bf16.mxu0 0
    %226 = vmatpush1.bf16.msra.mxu0 0
    %227 = vmatprep.subr.bf16.mxu0 0
    %228 = vmatpush1.bf16.msra.mxu0 0
    %229 = vmatprep.subr.bf16.mxu0 0
    %230 = vmatpush1.bf16.msra.mxu0 0
    %231 = vmatprep.subr.bf16.mxu0 0
    %232 = vmatpush1.bf16.msra.mxu0 0
    %233 = vmatprep.subr.bf16.mxu0 0
    %234 = vmatpush1.bf16.msra.mxu0 0
    %235 = vmatprep.subr.bf16.mxu0 0
    %236 = vmatpush1.bf16.msra.mxu0 0
    %237 = vmatprep.mubr.bf16.mxu0 0
    %238 = vmatmul.mubr.bf16.gmra.mrb[0].mxu0 %v133
    %v239 = vpop.f32.mrb[0].mxu0
    %v240 = vadd.f32 %v155, %v239
    %v241 = vpop.f32.mrb[0].mxu0
    %v242 = vpop.f32.mrb[0].mxu0
    %v243 = vpop.f32.mrb[0].mxu0
    %244 = vdwg.mxu0
    %v245 = vmax.f32 %v240, 0.0
    %v246 = vpack.c.bf16 %v245, %v245
    %v247 = vld [vmem:[#allocation8] sm:$0xf]
    %v248 = vld [vmem:[#allocation8 + $0x4] sm:$0xf]
    %v249 = vld [vmem:[#allocation8 + $0x8] sm:$0xf]
    %v250 = vld [vmem:[#allocation8 + $0xc] sm:$0xf]
    %v251 = vld [vmem:[#allocation8 + $0x10] sm:$0xf]
    %v252 = vld [vmem:[#allocation8 + $0x14] sm:$0xf]
    %v253 = vld [vmem:[#allocation8 + $0x18] sm:$0xf]
    %v254 = vld [vmem:[#allocation8 + $0x1c] sm:$0xf]
    %v255 = vld [vmem:[#allocation8 + $0x20] sm:$0xf]
    %v256 = vld [vmem:[#allocation8 + $0x24] sm:$0xf]
    %v257 = vld [vmem:[#allocation8 + $0x28] sm:$0xf]
    %v258 = vld [vmem:[#allocation8 + $0x2c] sm:$0xf]
    %v259 = vld [vmem:[#allocation8 + $0x30] sm:$0xf]
    %v260 = vld [vmem:[#allocation8 + $0x34] sm:$0xf]
    %v261 = vld [vmem:[#allocation8 + $0x38] sm:$0xf]
    %v262 = vld [vmem:[#allocation8 + $0x3c] sm:$0xf]
    %v279 = vunpack.c.l.b16 %v247
    %v280 = vunpack.c.l.b16 %v248
    %v281 = vunpack.c.l.b16 %v249
    %v282 = vunpack.c.l.b16 %v250
    %v283 = vunpack.c.l.b16 %v251
    %v284 = vunpack.c.l.b16 %v252
    %v285 = vunpack.c.l.b16 %v253
    %v286 = vunpack.c.l.b16 %v254
    %v287 = vunpack.c.l.b16 %v255
    %v288 = vunpack.c.l.b16 %v256
    %v289 = vunpack.c.l.b16 %v257
    %v290 = vunpack.c.l.b16 %v258
    %v291 = vunpack.c.l.b16 %v259
    %v292 = vunpack.c.l.b16 %v260
    %v293 = vunpack.c.l.b16 %v261
    %v294 = vunpack.c.l.b16 %v262
    %v295 = vpack.c.b16 %v280, %v279
    %v296 = vpack.c.b16 %v282, %v281
    %v297 = vpack.c.b16 %v284, %v283
    %v298 = vpack.c.b16 %v286, %v285
    %v299 = vpack.c.b16 %v288, %v287
    %v300 = vpack.c.b16 %v290, %v289
    %v301 = vpack.c.b16 %v292, %v291
    %v302 = vpack.c.b16 %v294, %v293
    %311 = vmatprep.subr.bf16.mxu0 0
    %312 = vmatpush1.bf16.msra.mxu0 %v295
    %313 = vmatprep.subr.bf16.mxu0 0
    %314 = vmatpush1.bf16.msra.mxu0 %v296
    %315 = vmatprep.subr.bf16.mxu0 0
    %316 = vmatpush1.bf16.msra.mxu0 %v297
    %317 = vmatprep.subr.bf16.mxu0 0
    %318 = vmatpush1.bf16.msra.mxu0 %v298
    %319 = vmatprep.subr.bf16.mxu0 0
    %320 = vmatpush1.bf16.msra.mxu0 %v299
    %321 = vmatprep.subr.bf16.mxu0 0
    %322 = vmatpush1.bf16.msra.mxu0 %v300
    %323 = vmatprep.subr.bf16.mxu0 0
    %324 = vmatpush1.bf16.msra.mxu0 %v301
    %325 = vmatprep.subr.bf16.mxu0 0
    %326 = vmatpush1.bf16.msra.mxu0 %v302
    %327 = vmatprep.subr.bf16.mxu0 0
    %328 = vmatpush1.bf16.msra.mxu0 0
    %329 = vmatprep.subr.bf16.mxu0 0
    %330 = vmatpush1.bf16.msra.mxu0 0
    %331 = vmatprep.subr.bf16.mxu0 0
    %332 = vmatpush1.bf16.msra.mxu0 0
    %333 = vmatprep.subr.bf16.mxu0 0
    %334 = vmatpush1.bf16.msra.mxu0 0
    %335 = vmatprep.subr.bf16.mxu0 0
    %336 = vmatpush1.bf16.msra.mxu0 0
    %337 = vmatprep.subr.bf16.mxu0 0
    %338 = vmatpush1.bf16.msra.mxu0 0
    %339 = vmatprep.subr.bf16.mxu0 0
    %340 = vmatpush1.bf16.msra.mxu0 0
    %341 = vmatprep.subr.bf16.mxu0 0
    %342 = vmatpush1.bf16.msra.mxu0 0
    %343 = vmatprep.mubr.bf16.mxu0 0
    %344 = vmatmul.mubr.bf16.gmra.mrb[0].mxu0 %v246
    %v345 = vpop.f32.mrb[0].mxu0
    %v346 = vadd.f32 0.0, %v345
    %v347 = vpop.f32.mrb[0].mxu0
    %v348 = vpop.f32.mrb[0].mxu0
    %v349 = vpop.f32.mrb[0].mxu0
    %350 = vdwg.mxu0
    %v351 = vld [vmem:[%s6] sm:$0x1]
    %v353 = vlaneseq
    %v354 = vshrl.u32 %v353, 7
    %v355 = vsub.s32 0, %v354
    %v356 = vrot.slane %v351, %v355
    %v358 = vadd.f32 %v346, %v356
    %vm359 = vcmask 58368
    %360 = vst.msk [vmem:[#allocation10] sm:$0x3] %vm359, %v358
    // Predicated region
    $region46: #{tpu_custom_call.1} parent=1 // pred_check
      _
    $region47: #{tpu_custom_call.1} parent=1 // pred_check_branch
      %362 = sbr.rel (0) target = $region49
    $region48: #{tpu_custom_call.1} parent=1 // pred_region
      %s364 = ssub.s32 32, 32
      %365 = vsyncadd [#allocation4], %s364
      %s367 = sshll.u32 [#allocation10], 4
      %s368 = int_to_ptr.vmem [resolvable:$true] %s367
      %370 = dma.vmem_to_hbm [thread:$0]  %s368, 32, %s7, [#allocation4]
    $region49: #{tpu_custom_call.1} parent=1 // pred_fallthru
      _
    // Predicated region
    $region50: #{tpu_custom_call.1} parent=1 // pred_check
      _
    $region51: #{tpu_custom_call.1} parent=1 // pred_check_branch
      %372 = sbr.rel (0) target = $region53
    $region52: #{tpu_custom_call.1} parent=1 // pred_region
      %373 = dma.done [#allocation4], 32
    $region53: #{tpu_custom_call.1} parent=1 // pred_fallthru
      _
    %374 = vsyncpa [#allocation3], 1
    %375 = vsyncpa [#allocation6], 1
    %376 = vsyncpa [#allocation9], 1
    %377 = vsyncpa [#allocation4], 1

</llo_original>
